<compile_context>
chip_gen: v5e
topology: v5e:2x2
jax: 0.10.0
libtpu: 0.0.40
codegen_flags: <defaults>
</compile_context>

<pallas_src>
import numpy as np
import jax
import jax.numpy as jnp
from jax.experimental import pallas as pl
from jax.experimental.pallas import tpu as pltpu

# ------------------------- model hyper-parameters (small) -------------------------
EPROJS = 32
DUNITS = 32
ATT_DIM = 32
SCALING = 2.0   # default scaling of AttCov.forward


# ------------------------------- Pallas kernel ------------------------------------
def _attcov_kernel(lens_ref,                                   # SMEM (B,) int32
                   enc_ref, dec_ref, cov_ref,                  # per-batch blocks
                   wenc_ref, wdec_ref, wvec_ref, bias_ref, g_ref,   # weights (VMEM)
                   c_ref, w_ref):                              # outputs
    """One grid step == one batch element.

    enc_ref : (1, T, E)   encoder hidden states for this batch element
    dec_ref : (1, 1, D)   decoder hidden state
    cov_ref : (1, T, 1)   coverage vector (sum of previous attention weights)
    wenc_ref: (E, A)      mlp_enc weight, transposed
    wdec_ref: (D, A)      mlp_dec weight, transposed (no bias)
    wvec_ref: (1, A)      wvec weight (column of Linear(1, A)) as a row
    bias_ref: (1, A)      mlp_enc bias + wvec bias (combined)
    g_ref   : (1, A)      gvec weight row, pre-scaled by `scaling`
    c_ref   : (1, 1, E)   attention context output
    w_ref   : (1, 1, T)   attention weights output (T on the lane axis)
    """
    b = pl.program_id(0)
    T = enc_ref.shape[1]

    enc = enc_ref[0]                                            # (T, E)
    dec = dec_ref[0]                                            # (1, D)
    cov = cov_ref[0]                                            # (T, 1)

    # Dense projections on the MXU.
    enc_proj = jnp.dot(enc, wenc_ref[...],
                       preferred_element_type=jnp.float32)      # (T, A)
    dec_proj = jnp.dot(dec, wdec_ref[...],
                       preferred_element_type=jnp.float32)      # (1, A)

    # Coverage term is a rank-1 outer product: cov[t] * wvec_row (VPU broadcast-mul).
    z = jnp.tanh(enc_proj + dec_proj + cov * wvec_ref[...] + bias_ref[...])  # (T, A)

    # Scores: e[t] = sum_a z[t, a] * g[a], computed as (1,A)·(T,A)^T on the MXU so
    # the result is already a lane-dense row (1, T).  `scaling` is folded into g.
    e = jax.lax.dot_general(g_ref[...], z, (((1,), (1,)), ((), ())),
                            preferred_element_type=jnp.float32)  # (1, T)
    # (gvec bias is uniform over T -> softmax-invariant -> omitted.)

    # Additive pad mask built from lengths in SMEM (finite, so no NaN even for
    # fully padded rows).
    t_idx = jax.lax.broadcasted_iota(jnp.int32, (1, T), 1)
    e = jnp.where(t_idx < lens_ref[b], e, jnp.float32(-1e30))

    # Softmax over T (lane axis).
    e = e - jnp.max(e, axis=1, keepdims=True)
    p = jnp.exp(e)
    denom = jnp.sum(p, axis=1, keepdims=True)
    inv = pl.reciprocal(denom, approx=True)                      # EUP slot
    inv = inv * (2.0 - denom * inv)                              # one Newton step
    w = p * inv                                                  # (1, T)

    # Context: (1, T) @ (T, E) on the MXU.
    c_ref[0] = jnp.dot(w, enc, preferred_element_type=jnp.float32)   # (1, E)
    w_ref[0] = w


# ------------------------------- parameter prep ------------------------------------
def prepare_attcov_params(params, scaling=SCALING):
    """Fold/transpose module weights into kernel-ready layout.

    Call this ONCE per model (outside the per-decoder-step loop): the attention is
    invoked every decode step and re-stacking weights per call would dominate the
    tiny kernel.
    """
    A = params["w_enc"].shape[0]
    return {
        "wenc_t": jnp.asarray(params["w_enc"], jnp.float32).T,             # (E, A)
        "wdec_t": jnp.asarray(params["w_dec"], jnp.float32).T,             # (D, A)
        "wvec_row": jnp.asarray(params["w_wvec"], jnp.float32).reshape(1, A),
        "b_comb": (jnp.asarray(params["b_enc"], jnp.float32)
                   + jnp.asarray(params["b_wvec"], jnp.float32)).reshape(1, A),
        "g_row": (scaling * jnp.asarray(params["w_gvec"], jnp.float32)).reshape(1, A),
        # gvec bias intentionally dropped: softmax-invariant, does not affect (c, w).
    }


# ------------------------------- wrapper -------------------------------------------
def att_cov(enc_hs_pad, enc_hs_len, dec_z, att_prev_list, kparams):
    """Forward pass matching AttCov.forward (scaling already folded into kparams).

    Returns (c, att_prev_list + [w]) with c: (B, eprojs), each w: (B, T).
    """
    # TODO(synk): the PyTorch module caches pre_compute_enc_h / mask across decoder
    # steps on `self`; this stateless wrapper recomputes the enc projection per call.
    enc_hs_pad = jnp.asarray(enc_hs_pad, jnp.float32)
    B, T, E = enc_hs_pad.shape
    D = kparams["wdec_t"].shape[0]
    A = kparams["wenc_t"].shape[1]

    lens = jnp.asarray(enc_hs_len, dtype=jnp.int32)              # (B,) -> SMEM

    if dec_z is None:
        dec_z = jnp.zeros((B, D), dtype=jnp.float32)
    else:
        dec_z = jnp.asarray(dec_z, jnp.float32).reshape(B, D)

    if att_prev_list is None:
        # uniform attention over valid positions: (1 - pad_mask) / length
        valid = (jnp.arange(T, dtype=jnp.int32)[None, :]
                 < lens[:, None]).astype(jnp.float32)            # (B, T)
        att_prev_list = [valid / lens[:, None].astype(jnp.float32)]

    cov = att_prev_list[0]
    for a in att_prev_list[1:]:
        cov = cov + a                                            # (B, T)

    dec3 = dec_z.reshape(B, 1, D)
    cov3 = cov.reshape(B, T, 1)

    grid_spec = pltpu.PrefetchScalarGridSpec(
        num_scalar_prefetch=1,
        grid=(B,),
        in_specs=[
            pl.BlockSpec((1, T, E), lambda b, lens: (b, 0, 0)),  # enc
            pl.BlockSpec((1, 1, D), lambda b, lens: (b, 0, 0)),  # dec_z
            pl.BlockSpec((1, T, 1), lambda b, lens: (b, 0, 0)),  # coverage
            pl.BlockSpec((E, A), lambda b, lens: (0, 0)),        # W_enc^T
            pl.BlockSpec((D, A), lambda b, lens: (0, 0)),        # W_dec^T
            pl.BlockSpec((1, A), lambda b, lens: (0, 0)),        # wvec row
            pl.BlockSpec((1, A), lambda b, lens: (0, 0)),        # combined bias
            pl.BlockSpec((1, A), lambda b, lens: (0, 0)),        # scaled gvec row
        ],
        out_specs=(
            pl.BlockSpec((1, 1, E), lambda b, lens: (b, 0, 0)),  # context
            pl.BlockSpec((1, 1, T), lambda b, lens: (b, 0, 0)),  # weights (T last)
        ),
    )

    c3, w3 = pl.pallas_call(
        _attcov_kernel,
        out_shape=(jax.ShapeDtypeStruct((B, 1, E), jnp.float32),
                   jax.ShapeDtypeStruct((B, 1, T), jnp.float32)),
        grid_spec=grid_spec,
        compiler_params=pltpu.CompilerParams(
            dimension_semantics=("parallel",)),
    )(lens, enc_hs_pad, dec3, cov3,
      kparams["wenc_t"], kparams["wdec_t"], kparams["wvec_row"],
      kparams["b_comb"], kparams["g_row"])

    c = c3[:, 0, :]                                              # (B, E)
    w = w3[:, 0, :]                                              # (B, T) — free view
    return c, att_prev_list + [w]


# ------------------------------- reference (numpy) ---------------------------------
def _reference(enc_hs_pad, enc_hs_len, dec_z, att_prev_list, params, scaling=SCALING):
    enc = np.asarray(enc_hs_pad, np.float32)
    B, T, E = enc.shape
    A = params["w_enc"].shape[0]
    lens = np.asarray(enc_hs_len)
    pad = np.arange(T)[None, :] >= lens[:, None]

    if dec_z is None:
        dec = np.zeros((B, DUNITS), np.float32)
    else:
        dec = np.asarray(dec_z, np.float32).reshape(B, DUNITS)

    if att_prev_list is None:
        att0 = (1.0 - pad.astype(np.float32)) / lens[:, None].astype(np.float32)
        att_prev_list = [att0]
    else:
        att_prev_list = [np.asarray(a, np.float32) for a in att_prev_list]

    cov = np.zeros((B, T), np.float32)
    for a in att_prev_list:
        cov = cov + a

    w_enc = np.asarray(params["w_enc"]); b_enc = np.asarray(params["b_enc"])
    w_dec = np.asarray(params["w_dec"])
    w_wvec = np.asarray(params["w_wvec"]).reshape(-1); b_wvec = np.asarray(params["b_wvec"])
    w_gvec = np.asarray(params["w_gvec"]).reshape(-1); b_gvec = np.asarray(params["b_gvec"])

    pre = enc @ w_enc.T + b_enc                                   # (B,T,A)
    cov_vec = cov[:, :, None] * w_wvec[None, None, :] + b_wvec    # (B,T,A)
    dec_t = (dec @ w_dec.T)[:, None, :]                           # (B,1,A)
    z = np.tanh(cov_vec + pre + dec_t)
    e = z @ w_gvec + b_gvec                                       # (B,T)
    e = np.where(pad, -np.inf, e)
    es = scaling * e
    es = es - es.max(axis=1, keepdims=True)
    p = np.exp(es)
    w = p / p.sum(axis=1, keepdims=True)
    c = np.sum(enc * w[:, :, None], axis=1)
    return c, att_prev_list + [w]


# ---------------------------------- main --------------------------------------------
if __name__ == "__main__":
    key = jax.random.PRNGKey(0)
    ks = jax.random.split(key, 10)

    B, T = 2, 8
    enc_hs_pad = jax.random.normal(ks[0], (B, T, EPROJS), dtype=jnp.float32)
    dec_z1 = jax.random.normal(ks[1], (B, DUNITS), dtype=jnp.float32)
    dec_z2 = jax.random.normal(ks[2], (B, DUNITS), dtype=jnp.float32)
    enc_hs_len = [8, 6]

    # Deterministic parameter init (shapes follow the PyTorch module's Linear layers).
    scale = 0.1
    params = {
        "w_enc": scale * jax.random.normal(ks[3], (ATT_DIM, EPROJS), jnp.float32),
        "b_enc": scale * jax.random.normal(ks[4], (ATT_DIM,), jnp.float32),
        "w_dec": scale * jax.random.normal(ks[5], (ATT_DIM, DUNITS), jnp.float32),
        "w_wvec": scale * jax.random.normal(ks[6], (ATT_DIM, 1), jnp.float32),
        "b_wvec": scale * jax.random.normal(ks[7], (ATT_DIM,), jnp.float32),
        "w_gvec": scale * jax.random.normal(ks[8], (1, ATT_DIM), jnp.float32),
        "b_gvec": scale * jax.random.normal(ks[9], (1,), jnp.float32),
    }

    # Weight folding happens ONCE (outside the decode loop).
    kparams = prepare_attcov_params(params, scaling=SCALING)

    # Step 1: no previous attention (module builds the uniform coverage init).
    c1, att_list1 = att_cov(enc_hs_pad, enc_hs_len, dec_z1, None, kparams)
    # Step 2: coverage accumulates over the previous attention weights.
    c2, att_list2 = att_cov(enc_hs_pad, enc_hs_len, dec_z2, att_list1, kparams)

    c1 = jax.block_until_ready(c1)
    c2 = jax.block_until_ready(c2)
    w1 = jax.block_until_ready(att_list1[-1])
    w2 = jax.block_until_ready(att_list2[-1])

    # Sanity check against a pure-numpy reference of the PyTorch forward.
    c1_ref, att1_ref = _reference(enc_hs_pad, enc_hs_len, dec_z1, None, params)
    c2_ref, att2_ref = _reference(enc_hs_pad, enc_hs_len, dec_z2,
                                  [np.asarray(a) for a in att_list1], params)

    np.testing.assert_allclose(np.asarray(c1), c1_ref, rtol=1e-4, atol=1e-4)
    np.testing.assert_allclose(np.asarray(w1), att1_ref[-1], rtol=1e-4, atol=1e-4)
    np.testing.assert_allclose(np.asarray(c2), c2_ref, rtol=1e-4, atol=1e-4)
    np.testing.assert_allclose(np.asarray(w2), att2_ref[-1], rtol=1e-4, atol=1e-4)

    print("KERNEL_OK")
</pallas_src>

<mosaic_0001>
module attributes {stable_mosaic.version = 11 : i64} {
  func.func @_attcov_kernel(%arg0: i32, %arg1: memref<2xi32, #tpu.memory_space<smem>>, %arg2: memref<1x8x32xf32, #tpu.memory_space<vmem>>, %arg3: memref<1x1x32xf32, #tpu.memory_space<vmem>>, %arg4: memref<1x8x1xf32, #tpu.memory_space<vmem>>, %arg5: memref<32x32xf32, #tpu.memory_space<vmem>>, %arg6: memref<32x32xf32, #tpu.memory_space<vmem>>, %arg7: memref<1x32xf32, #tpu.memory_space<vmem>>, %arg8: memref<1x32xf32, #tpu.memory_space<vmem>>, %arg9: memref<1x32xf32, #tpu.memory_space<vmem>>, %arg10: memref<1x1x32xf32, #tpu.memory_space<vmem>>, %arg11: memref<1x1x8xf32, #tpu.memory_space<vmem>>) attributes {dimension_semantics = [#tpu.dimension_semantics<parallel>], iteration_bounds = array<i64: 2>, scalar_prefetch = 1 : i64, scratch_operands = 0 : i64, tpu.core_type = #tpu.core_type<tc>, window_params = [{transform_indices = @transform_0, window_bounds = array<i64: 1, 8, 32>}, {transform_indices = @transform_1, window_bounds = array<i64: 1, 1, 32>}, {transform_indices = @transform_2, window_bounds = array<i64: 1, 8, 1>}, {pipeline_mode = #tpu.pipeline_mode<synchronous>, transform_indices = @transform_3, window_bounds = array<i64: 32, 32>}, {pipeline_mode = #tpu.pipeline_mode<synchronous>, transform_indices = @transform_4, window_bounds = array<i64: 32, 32>}, {pipeline_mode = #tpu.pipeline_mode<synchronous>, transform_indices = @transform_5, window_bounds = array<i64: 1, 32>}, {pipeline_mode = #tpu.pipeline_mode<synchronous>, transform_indices = @transform_6, window_bounds = array<i64: 1, 32>}, {pipeline_mode = #tpu.pipeline_mode<synchronous>, transform_indices = @transform_7, window_bounds = array<i64: 1, 32>}, {transform_indices = @transform_8, window_bounds = array<i64: 1, 1, 32>}, {transform_indices = @transform_9, window_bounds = array<i64: 1, 1, 8>}]} {
    %c0 = arith.constant 0 : index
    %c0_0 = arith.constant 0 : index
    %c0_1 = arith.constant 0 : index
    %0 = vector.load %arg2[%c0, %c0_0, %c0_1] : memref<1x8x32xf32, #tpu.memory_space<vmem>>, vector<1x8x32xf32>
    %1 = vector.shape_cast %0 : vector<1x8x32xf32> to vector<8x32xf32>
    %c0_2 = arith.constant 0 : index
    %c0_3 = arith.constant 0 : index
    %c0_4 = arith.constant 0 : index
    %2 = vector.load %arg3[%c0_2, %c0_3, %c0_4] : memref<1x1x32xf32, #tpu.memory_space<vmem>>, vector<1x1x32xf32>
    %3 = vector.shape_cast %2 : vector<1x1x32xf32> to vector<1x32xf32>
    %c0_5 = arith.constant 0 : index
    %c0_6 = arith.constant 0 : index
    %c0_7 = arith.constant 0 : index
    %4 = vector.load %arg4[%c0_5, %c0_6, %c0_7] : memref<1x8x1xf32, #tpu.memory_space<vmem>>, vector<1x8x1xf32>
    %5 = vector.shape_cast %4 : vector<1x8x1xf32> to vector<8x1xf32>
    %c0_8 = arith.constant 0 : index
    %c0_9 = arith.constant 0 : index
    %6 = vector.load %arg5[%c0_8, %c0_9] : memref<32x32xf32, #tpu.memory_space<vmem>>, vector<32x32xf32>
    %cst = arith.constant dense<0.000000e+00> : vector<8x32xf32>
    %7 = tpu.matmul %1, %6, %cst {dimension_numbers = #tpu.dot_dimension_numbers<[1], [0], [0], [1], [0, 0, 1, 1], [], []>} : vector<8x32xf32>, vector<32x32xf32>, vector<8x32xf32> -> vector<8x32xf32>
    %c0_10 = arith.constant 0 : index
    %c0_11 = arith.constant 0 : index
    %8 = vector.load %arg6[%c0_10, %c0_11] : memref<32x32xf32, #tpu.memory_space<vmem>>, vector<32x32xf32>
    %cst_12 = arith.constant dense<0.000000e+00> : vector<1x32xf32>
    %9 = tpu.matmul %3, %8, %cst_12 {dimension_numbers = #tpu.dot_dimension_numbers<[1], [0], [0], [1], [0, 0, 1, 1], [], []>} : vector<1x32xf32>, vector<32x32xf32>, vector<1x32xf32> -> vector<1x32xf32>
    %10 = vector.broadcast %9 : vector<1x32xf32> to vector<8x32xf32>
    %11 = arith.addf %7, %10 : vector<8x32xf32>
    %c0_13 = arith.constant 0 : index
    %c0_14 = arith.constant 0 : index
    %12 = vector.load %arg7[%c0_13, %c0_14] : memref<1x32xf32, #tpu.memory_space<vmem>>, vector<1x32xf32>
    %13 = vector.broadcast %5 : vector<8x1xf32> to vector<8x32xf32>
    %14 = vector.broadcast %12 : vector<1x32xf32> to vector<8x32xf32>
    %15 = arith.mulf %13, %14 : vector<8x32xf32>
    %16 = arith.addf %11, %15 : vector<8x32xf32>
    %c0_15 = arith.constant 0 : index
    %c0_16 = arith.constant 0 : index
    %17 = vector.load %arg8[%c0_15, %c0_16] : memref<1x32xf32, #tpu.memory_space<vmem>>, vector<1x32xf32>
    %18 = vector.broadcast %17 : vector<1x32xf32> to vector<8x32xf32>
    %19 = arith.addf %16, %18 : vector<8x32xf32>
    %20 = math.tanh %19 : vector<8x32xf32>
    %c0_17 = arith.constant 0 : index
    %c0_18 = arith.constant 0 : index
    %21 = vector.load %arg9[%c0_17, %c0_18] : memref<1x32xf32, #tpu.memory_space<vmem>>, vector<1x32xf32>
    %cst_19 = arith.constant dense<0.000000e+00> : vector<1x8xf32>
    %22 = tpu.matmul %21, %20, %cst_19 {dimension_numbers = #tpu.dot_dimension_numbers<[1], [1], [0], [0], [0, 0, 1, 0], [], []>} : vector<1x32xf32>, vector<8x32xf32>, vector<1x8xf32> -> vector<1x8xf32>
    %23 = tpu.iota {dimensions = array<i32: 1>} : vector<1x8xi32>
    %24 = arith.index_cast %arg0 : i32 to index
    %25 = memref.load %arg1[%24] : memref<2xi32, #tpu.memory_space<smem>>
    %26 = vector.broadcast %25 : i32 to vector<1x8xi32>
    %27 = arith.cmpi slt, %23, %26 : vector<1x8xi32>
    %cst_20 = arith.constant -1.000000e+30 : f32
    %28 = vector.broadcast %cst_20 : f32 to vector<1x8xf32>
    %29 = arith.select %27, %22, %28 : vector<1x8xi1>, vector<1x8xf32>
    %cst_21 = arith.constant dense<0xFF800000> : vector<1xf32>
    %30 = vector.multi_reduction <maximumf>, %29, %cst_21 [1] : vector<1x8xf32> to vector<1xf32>
    %31 = vector.shape_cast %30 : vector<1xf32> to vector<1x1xf32>
    %32 = vector.broadcast %31 : vector<1x1xf32> to vector<1x8xf32>
    %33 = arith.subf %29, %32 : vector<1x8xf32>
    %34 = math.exp %33 : vector<1x8xf32>
    %cst_22 = arith.constant dense<0.000000e+00> : vector<1xf32>
    %35 = vector.multi_reduction <add>, %34, %cst_22 [1] : vector<1x8xf32> to vector<1xf32>
    %36 = vector.shape_cast %35 : vector<1xf32> to vector<1x1xf32>
    %37 = tpu.reciprocal %36 {approx = true} : vector<1x1xf32> -> vector<1x1xf32>
    %38 = arith.mulf %36, %37 : vector<1x1xf32>
    %cst_23 = arith.constant 2.000000e+00 : f32
    %39 = vector.broadcast %cst_23 : f32 to vector<1x1xf32>
    %40 = arith.subf %39, %38 : vector<1x1xf32>
    %41 = arith.mulf %37, %40 : vector<1x1xf32>
    %42 = vector.broadcast %41 : vector<1x1xf32> to vector<1x8xf32>
    %43 = arith.mulf %34, %42 : vector<1x8xf32>
    %cst_24 = arith.constant dense<0.000000e+00> : vector<1x32xf32>
    %44 = tpu.matmul %43, %1, %cst_24 {dimension_numbers = #tpu.dot_dimension_numbers<[1], [0], [0], [1], [0, 0, 1, 1], [], []>} : vector<1x8xf32>, vector<8x32xf32>, vector<1x32xf32> -> vector<1x32xf32>
    %c0_25 = arith.constant 0 : index
    %c0_26 = arith.constant 0 : index
    %c0_27 = arith.constant 0 : index
    %45 = vector.load %arg10[%c0_25, %c0_26, %c0_27] : memref<1x1x32xf32, #tpu.memory_space<vmem>>, vector<1x1x32xf32>
    %46 = vector.shape_cast %45 : vector<1x1x32xf32> to vector<1x32xf32>
    %47 = vector.shape_cast %44 : vector<1x32xf32> to vector<1x1x32xf32>
    tpu.vector_store %arg10[%c0_25, %c0_26, %c0_27], %47 {strides = array<i32>} : memref<1x1x32xf32, #tpu.memory_space<vmem>>, vector<1x1x32xf32>,
    %c0_28 = arith.constant 0 : index
    %c0_29 = arith.constant 0 : index
    %c0_30 = arith.constant 0 : index
    %48 = vector.load %arg11[%c0_28, %c0_29, %c0_30] : memref<1x1x8xf32, #tpu.memory_space<vmem>>, vector<1x1x8xf32>
    %49 = vector.shape_cast %48 : vector<1x1x8xf32> to vector<1x8xf32>
    %50 = vector.shape_cast %43 : vector<1x8xf32> to vector<1x1x8xf32>
    tpu.vector_store %arg11[%c0_28, %c0_29, %c0_30], %50 {strides = array<i32>} : memref<1x1x8xf32, #tpu.memory_space<vmem>>, vector<1x1x8xf32>,
    return
  }
  func.func @transform_0(%arg0: i32, %arg1: memref<2xi32, #tpu.memory_space<smem>>) -> (i32, i32, i32) {
    %c0_i32 = arith.constant 0 : i32
    %c0_i32_0 = arith.constant 0 : i32
    %c0_i32_1 = arith.constant 0 : i32
    return %arg0, %c0_i32, %c0_i32_0 : i32, i32, i32
  }
  func.func @transform_1(%arg0: i32, %arg1: memref<2xi32, #tpu.memory_space<smem>>) -> (i32, i32, i32) {
    %c0_i32 = arith.constant 0 : i32
    %c0_i32_0 = arith.constant 0 : i32
    %c0_i32_1 = arith.constant 0 : i32
    return %arg0, %c0_i32, %c0_i32_0 : i32, i32, i32
  }
  func.func @transform_2(%arg0: i32, %arg1: memref<2xi32, #tpu.memory_space<smem>>) -> (i32, i32, i32) {
    %c0_i32 = arith.constant 0 : i32
    %c0_i32_0 = arith.constant 0 : i32
    %c0_i32_1 = arith.constant 0 : i32
    return %arg0, %c0_i32, %c0_i32_0 : i32, i32, i32
  }
  func.func @transform_3(%arg0: i32, %arg1: memref<2xi32, #tpu.memory_space<smem>>) -> (i32, i32) {
    %c0_i32 = arith.constant 0 : i32
    %c0_i32_0 = arith.constant 0 : i32
    %c0_i32_1 = arith.constant 0 : i32
    return %c0_i32, %c0_i32_0 : i32, i32
  }
  func.func @transform_4(%arg0: i32, %arg1: memref<2xi32, #tpu.memory_space<smem>>) -> (i32, i32) {
    %c0_i32 = arith.constant 0 : i32
    %c0_i32_0 = arith.constant 0 : i32
    %c0_i32_1 = arith.constant 0 : i32
    return %c0_i32, %c0_i32_0 : i32, i32
  }
  func.func @transform_5(%arg0: i32, %arg1: memref<2xi32, #tpu.memory_space<smem>>) -> (i32, i32) {
    %c0_i32 = arith.constant 0 : i32
    %c0_i32_0 = arith.constant 0 : i32
    %c0_i32_1 = arith.constant 0 : i32
    return %c0_i32, %c0_i32_0 : i32, i32
  }
  func.func @transform_6(%arg0: i32, %arg1: memref<2xi32, #tpu.memory_space<smem>>) -> (i32, i32) {
    %c0_i32 = arith.constant 0 : i32
    %c0_i32_0 = arith.constant 0 : i32
    %c0_i32_1 = arith.constant 0 : i32
    return %c0_i32, %c0_i32_0 : i32, i32
  }
  func.func @transform_7(%arg0: i32, %arg1: memref<2xi32, #tpu.memory_space<smem>>) -> (i32, i32) {
    %c0_i32 = arith.constant 0 : i32
    %c0_i32_0 = arith.constant 0 : i32
    %c0_i32_1 = arith.constant 0 : i32
    return %c0_i32, %c0_i32_0 : i32, i32
  }
  func.func @transform_8(%arg0: i32, %arg1: memref<2xi32, #tpu.memory_space<smem>>) -> (i32, i32, i32) {
    %c0_i32 = arith.constant 0 : i32
    %c0_i32_0 = arith.constant 0 : i32
    %c0_i32_1 = arith.constant 0 : i32
    return %arg0, %c0_i32, %c0_i32_0 : i32, i32, i32
  }
  func.func @transform_9(%arg0: i32, %arg1: memref<2xi32, #tpu.memory_space<smem>>) -> (i32, i32, i32) {
    %c0_i32 = arith.constant 0 : i32
    %c0_i32_0 = arith.constant 0 : i32
    %c0_i32_1 = arith.constant 0 : i32
    return %arg0, %c0_i32, %c0_i32_0 : i32, i32, i32
  }
}

</mosaic_0001>

<llo_original>
// kernel: tpu_custom_call.1
$region0: #{tpu_custom_call.1}
  #allocation0 [shape = 'u32[]', space=smem, size = 0x4, offset = 0x4, fixed_abs, tag = 'smem constant byte address 0x4 - core index']
  #allocation1 [shape = 'u32[72,128]{1,0:T(1,128)}', space=vmem, size = 0x9000, scoped, tag = 'internal scratch']
  #allocation2 [shape = 's32[1]{0}', space=sflag, size = 0x4, scoped, tag = 'scoped memory for tpu_custom_call.1']
  #allocation3 [shape = 'u8[512]{0}', space=smem, size = 0x200, scoped, tag = 'prefetched SMEM operand 0']
  %s0 = inlined_call_operand.hbm [shape: s32[2], index: 0, kind: input, shape index: {}]
  %s1 = inlined_call_operand.vmem [shape: f32[2,8,32], index: 1, kind: input, shape index: {}]
  %s2 = inlined_call_operand.vmem [shape: f32[2,1,32], index: 2, kind: input, shape index: {}]
  %s3 = inlined_call_operand.vmem [shape: f32[2,8,1], index: 3, kind: input, shape index: {}]
  %s4 = inlined_call_operand.hbm [shape: f32[32,32], index: 4, kind: input, shape index: {}]
  %s5 = inlined_call_operand.hbm [shape: f32[32,32], index: 5, kind: input, shape index: {}]
  %s6 = inlined_call_operand.vmem [shape: f32[1,32], index: 6, kind: input, shape index: {}]
  %s7 = inlined_call_operand.vmem [shape: f32[1,32], index: 7, kind: input, shape index: {}]
  %s8 = inlined_call_operand.vmem [shape: f32[1,32], index: 8, kind: input, shape index: {}]
  %s9 = inlined_call_operand.hbm [shape: f32[2,1,32], index: 9, kind: output, shape index: {0}]
  %s10 = inlined_call_operand.hbm [shape: f32[2,1,8], index: 10, kind: output, shape index: {1}]
  %11 = xla_tuple %s9, %s10
  %s12 = sld [smem:[#allocation0]]
  $region81: #{tpu_custom_call.1} parent=0
    _
  %s14 = ssub.s32 1, %s12
  %s15 = scalar_select 0, %s14, %s12
  %s17 = sshll.u32 %s0, 4
  %s18 = int_to_ptr.hbm [resolvable:$true] %s17
  %20 = dma.hbm_to_smem %s18, 16, [#allocation3], [#allocation2]
  %22 = dma.done [#allocation2], 16
  %23 = sfence
  $region1: #{tpu_custom_call.1} parent=0
    #allocation4 [shape = 'u8[16384]{0}', space=vmem, size = 0x4000, scoped, tag = 'input window, operand 4, single buffered']
    #allocation5 [shape = 's32[2]{0}', space=sflag, size = 0x8, scoped, tag = 'scoped memory for tpu_custom_call.1']
    #allocation6 [shape = 's32[2]{0}', space=sflag, size = 0x8, scoped, tag = 'scoped memory for tpu_custom_call.1']
    #allocation7 [shape = 'u8[16384]{0}', space=vmem, size = 0x4000, scoped, tag = 'input window, operand 5, single buffered']
    #allocation8 [shape = 's32[1]{0}', space=sflag, size = 0x4, scoped, tag = 'scoped memory for tpu_custom_call.1']
    #allocation9 [shape = 'u8[1024]{0}', space=vmem, size = 0x400, scoped, tag = 'output window, operand 0']
    #allocation10 [shape = 'u8[1024]{0}', space=vmem, size = 0x400, scoped, tag = 'output window, operand 1']
    #allocation11 [shape = 's32[2]{0}', space=sflag, size = 0x8, scoped, tag = 'scoped memory for tpu_custom_call.1']
    %24 = vsyncpa [#allocation5], 0
    %25 = vsyncpa [#allocation8], 0
    %26 = vsyncpa [#allocation6], 0
    %s27 = scalar_lea.sflag [#allocation6], 1
    %28 = vsyncpa %s27, 0
    %29 = vsyncpa [#allocation11], 0
    %s30 = scalar_lea.sflag [#allocation11], 1
    %31 = vsyncpa %s30, 0
    loop: start=0, step=1, limit=4
    $region2: #{tpu_custom_call.1} parent=1 // loop_pre_header
      _
    $region3: #{tpu_custom_call.1} parent=1 // loop_header
      %s33 = sphi 0, %s37
      %p34 = scmp.ge.s32.totalorder %s33, 4
      %s43 = sphi 0, %s45
      %s46 = sphi 0, %s43
      %s47 = sphi 0, %s46
      %s63 = sphi 0, %s47
      %s69 = sphi 0, %s71
      %s72 = sphi 0, %s69
      %s73 = sphi 0, %s72
      %s89 = sphi 0, %s73
      %s95 = sphi 0, %s97
      %s98 = sphi 0, %s95
      %s99 = sphi 0, %s98
      %s115 = sphi 0, %s99
      %s119 = sphi 0, %s119
      %s121 = sphi 0, %s119
      %s122 = sphi 0, %s121
      %s136 = sphi 0, %s122
      %s140 = sphi 0, %s140
      %s142 = sphi 0, %s140
      %s143 = sphi 0, %s142
      %s157 = sphi 0, %s143
      %s161 = sphi 0, %s161
      %s163 = sphi 0, %s161
      %s164 = sphi 0, %s163
      %s178 = sphi 0, %s164
      %s182 = sphi 0, %s182
      %s184 = sphi 0, %s182
      %s185 = sphi 0, %s184
      %s199 = sphi 0, %s185
      %s203 = sphi 0, %s203
      %s205 = sphi 0, %s203
      %s206 = sphi 0, %s205
      %s220 = sphi 0, %s206
      %s226 = sphi 0, %s228
      %s229 = sphi 0, %s226
      %s230 = sphi 0, %s229
      %s246 = sphi 0, %s230
      %s252 = sphi 0, %s254
      %s255 = sphi 0, %s252
      %s256 = sphi 0, %s255
      %s272 = sphi 0, %s256
    $region4: #{tpu_custom_call.1} parent=1 // loop_header_branch
      %36 = sbr.rel (%p34) target = $region8
    $region5: #{tpu_custom_call.1} parent=1 // loop_body
      %s38 = ssub.s32 %s33, 1
      %s39 = ssub.s32 %s33, 2
      %s40 = sadd.s32 %s33, 1
      %s41 = ssub.s32 %s33, %s40
      %p42 = scmp.eq.s32.totalorder %s41, 0
      %s44 = sadd.s32 %s43, 1
      %s45 = scalar_select %p42, %s43, %s44
      %p48 = pneg %p42
      %p49 = scmp.eq.s32.totalorder %s33, 1
      %p50 = por %p48, %p49
      %p51 = scmp.ne.s32.totalorder %s43, %s46
      %p52 = scmp.eq.s32.totalorder %s33, 0
      %p53 = por %p51, %p52
      %p54 = scmp.ne.s32.totalorder %s43, %s46
      %p55 = scmp.eq.s32.totalorder %s38, 1
      %p56 = por %p54, %p55
      %p57 = scmp.ne.s32.totalorder %s46, %s47
      %p58 = scmp.eq.s32.totalorder %s38, 0
      %p59 = por %p57, %p58
      %p60 = scmp.ne.s32.totalorder %s46, %s47
      %p61 = scmp.eq.s32.totalorder %s39, 1
      %p62 = por %p60, %p61
      %p64 = scmp.ne.s32.totalorder %s47, %s63
      %p65 = scmp.eq.s32.totalorder %s39, 0
      %p66 = por %p64, %p65
      %s67 = ssub.s32 %s33, %s40
      %p68 = scmp.eq.s32.totalorder %s67, 0
      %s70 = sadd.s32 %s69, 1
      %s71 = scalar_select %p68, %s69, %s70
      %p74 = pneg %p68
      %p75 = scmp.eq.s32.totalorder %s33, 1
      %p76 = por %p74, %p75
      %p77 = scmp.ne.s32.totalorder %s69, %s72
      %p78 = scmp.eq.s32.totalorder %s33, 0
      %p79 = por %p77, %p78
      %p80 = scmp.ne.s32.totalorder %s69, %s72
      %p81 = scmp.eq.s32.totalorder %s38, 1
      %p82 = por %p80, %p81
      %p83 = scmp.ne.s32.totalorder %s72, %s73
      %p84 = scmp.eq.s32.totalorder %s38, 0
      %p85 = por %p83, %p84
      %p86 = scmp.ne.s32.totalorder %s72, %s73
      %p87 = scmp.eq.s32.totalorder %s39, 1
      %p88 = por %p86, %p87
      %p90 = scmp.ne.s32.totalorder %s73, %s89
      %p91 = scmp.eq.s32.totalorder %s39, 0
      %p92 = por %p90, %p91
      %s93 = ssub.s32 %s33, %s40
      %p94 = scmp.eq.s32.totalorder %s93, 0
      %s96 = sadd.s32 %s95, 1
      %s97 = scalar_select %p94, %s95, %s96
      %p100 = pneg %p94
      %p101 = scmp.eq.s32.totalorder %s33, 1
      %p102 = por %p100, %p101
      %p103 = scmp.ne.s32.totalorder %s95, %s98
      %p104 = scmp.eq.s32.totalorder %s33, 0
      %p105 = por %p103, %p104
      %p106 = scmp.ne.s32.totalorder %s95, %s98
      %p107 = scmp.eq.s32.totalorder %s38, 1
      %p108 = por %p106, %p107
      %p109 = scmp.ne.s32.totalorder %s98, %s99
      %p110 = scmp.eq.s32.totalorder %s38, 0
      %p111 = por %p109, %p110
      %p112 = scmp.ne.s32.totalorder %s98, %s99
      %p113 = scmp.eq.s32.totalorder %s39, 1
      %p114 = por %p112, %p113
      %p116 = scmp.ne.s32.totalorder %s99, %s115
      %p117 = scmp.eq.s32.totalorder %s39, 0
      %p118 = por %p116, %p117
      %s120 = sadd.s32 %s119, 1
      %p123 = scmp.eq.s32.totalorder %s33, 1
      %p124 = scmp.ne.s32.totalorder %s119, %s121
      %p125 = scmp.eq.s32.totalorder %s33, 0
      %p126 = por %p124, %p125
      %p127 = scmp.ne.s32.totalorder %s119, %s121
      %p128 = scmp.eq.s32.totalorder %s38, 1
      %p129 = por %p127, %p128
      %p130 = scmp.ne.s32.totalorder %s121, %s122
      %p131 = scmp.eq.s32.totalorder %s38, 0
      %p132 = por %p130, %p131
      %p133 = scmp.ne.s32.totalorder %s121, %s122
      %p134 = scmp.eq.s32.totalorder %s39, 1
      %p135 = por %p133, %p134
      %p137 = scmp.ne.s32.totalorder %s122, %s136
      %p138 = scmp.eq.s32.totalorder %s39, 0
      %p139 = por %p137, %p138
      %s141 = sadd.s32 %s140, 1
      %p144 = scmp.eq.s32.totalorder %s33, 1
      %p145 = scmp.ne.s32.totalorder %s140, %s142
      %p146 = scmp.eq.s32.totalorder %s33, 0
      %p147 = por %p145, %p146
      %p148 = scmp.ne.s32.totalorder %s140, %s142
      %p149 = scmp.eq.s32.totalorder %s38, 1
      %p150 = por %p148, %p149
      %p151 = scmp.ne.s32.totalorder %s142, %s143
      %p152 = scmp.eq.s32.totalorder %s38, 0
      %p153 = por %p151, %p152
      %p154 = scmp.ne.s32.totalorder %s142, %s143
      %p155 = scmp.eq.s32.totalorder %s39, 1
      %p156 = por %p154, %p155
      %p158 = scmp.ne.s32.totalorder %s143, %s157
      %p159 = scmp.eq.s32.totalorder %s39, 0
      %p160 = por %p158, %p159
      %s162 = sadd.s32 %s161, 1
      %p165 = scmp.eq.s32.totalorder %s33, 1
      %p166 = scmp.ne.s32.totalorder %s161, %s163
      %p167 = scmp.eq.s32.totalorder %s33, 0
      %p168 = por %p166, %p167
      %p169 = scmp.ne.s32.totalorder %s161, %s163
      %p170 = scmp.eq.s32.totalorder %s38, 1
      %p171 = por %p169, %p170
      %p172 = scmp.ne.s32.totalorder %s163, %s164
      %p173 = scmp.eq.s32.totalorder %s38, 0
      %p174 = por %p172, %p173
      %p175 = scmp.ne.s32.totalorder %s163, %s164
      %p176 = scmp.eq.s32.totalorder %s39, 1
      %p177 = por %p175, %p176
      %p179 = scmp.ne.s32.totalorder %s164, %s178
      %p180 = scmp.eq.s32.totalorder %s39, 0
      %p181 = por %p179, %p180
      %s183 = sadd.s32 %s182, 1
      %p186 = scmp.eq.s32.totalorder %s33, 1
      %p187 = scmp.ne.s32.totalorder %s182, %s184
      %p188 = scmp.eq.s32.totalorder %s33, 0
      %p189 = por %p187, %p188
      %p190 = scmp.ne.s32.totalorder %s182, %s184
      %p191 = scmp.eq.s32.totalorder %s38, 1
      %p192 = por %p190, %p191
      %p193 = scmp.ne.s32.totalorder %s184, %s185
      %p194 = scmp.eq.s32.totalorder %s38, 0
      %p195 = por %p193, %p194
      %p196 = scmp.ne.s32.totalorder %s184, %s185
      %p197 = scmp.eq.s32.totalorder %s39, 1
      %p198 = por %p196, %p197
      %p200 = scmp.ne.s32.totalorder %s185, %s199
      %p201 = scmp.eq.s32.totalorder %s39, 0
      %p202 = por %p200, %p201
      %s204 = sadd.s32 %s203, 1
      %p207 = scmp.eq.s32.totalorder %s33, 1
      %p208 = scmp.ne.s32.totalorder %s203, %s205
      %p209 = scmp.eq.s32.totalorder %s33, 0
      %p210 = por %p208, %p209
      %p211 = scmp.ne.s32.totalorder %s203, %s205
      %p212 = scmp.eq.s32.totalorder %s38, 1
      %p213 = por %p211, %p212
      %p214 = scmp.ne.s32.totalorder %s205, %s206
      %p215 = scmp.eq.s32.totalorder %s38, 0
      %p216 = por %p214, %p215
      %p217 = scmp.ne.s32.totalorder %s205, %s206
      %p218 = scmp.eq.s32.totalorder %s39, 1
      %p219 = por %p217, %p218
      %p221 = scmp.ne.s32.totalorder %s206, %s220
      %p222 = scmp.eq.s32.totalorder %s39, 0
      %p223 = por %p221, %p222
      %s224 = ssub.s32 %s33, %s40
      %p225 = scmp.eq.s32.totalorder %s224, 0
      %s227 = sadd.s32 %s226, 1
      %s228 = scalar_select %p225, %s226, %s227
      %p231 = pneg %p225
      %p232 = scmp.eq.s32.totalorder %s33, 1
      %p233 = por %p231, %p232
      %p234 = scmp.ne.s32.totalorder %s226, %s229
      %p235 = scmp.eq.s32.totalorder %s33, 0
      %p236 = por %p234, %p235
      %p237 = scmp.ne.s32.totalorder %s226, %s229
      %p238 = scmp.eq.s32.totalorder %s38, 1
      %p239 = por %p237, %p238
      %p240 = scmp.ne.s32.totalorder %s229, %s230
      %p241 = scmp.eq.s32.totalorder %s38, 0
      %p242 = por %p240, %p241
      %p243 = scmp.ne.s32.totalorder %s229, %s230
      %p244 = scmp.eq.s32.totalorder %s39, 1
      %p245 = por %p243, %p244
      %p247 = scmp.ne.s32.totalorder %s230, %s246
      %p248 = scmp.eq.s32.totalorder %s39, 0
      %p249 = por %p247, %p248
      %s250 = ssub.s32 %s33, %s40
      %p251 = scmp.eq.s32.totalorder %s250, 0
      %s253 = sadd.s32 %s252, 1
      %s254 = scalar_select %p251, %s252, %s253
      %p257 = pneg %p251
      %p258 = scmp.eq.s32.totalorder %s33, 1
      %p259 = por %p257, %p258
      %p260 = scmp.ne.s32.totalorder %s252, %s255
      %p261 = scmp.eq.s32.totalorder %s33, 0
      %p262 = por %p260, %p261
      %p263 = scmp.ne.s32.totalorder %s252, %s255
      %p264 = scmp.eq.s32.totalorder %s38, 1
      %p265 = por %p263, %p264
      %p266 = scmp.ne.s32.totalorder %s255, %s256
      %p267 = scmp.eq.s32.totalorder %s38, 0
      %p268 = por %p266, %p267
      %p269 = scmp.ne.s32.totalorder %s255, %s256
      %p270 = scmp.eq.s32.totalorder %s39, 1
      %p271 = por %p269, %p270
      %p273 = scmp.ne.s32.totalorder %s256, %s272
      %p274 = scmp.eq.s32.totalorder %s39, 0
      %p275 = por %p273, %p274
      %p276 = scmp.le.s32.totalorder 1, %s33
      %p277 = scmp.lt.s32.totalorder %s33, 3
      %p278 = pnand %p276, %p277
      %p279 = pneg %p278
      // Predicated region
      $region9: #{tpu_custom_call.1} parent=5 // pred_check
        _
      $region10: #{tpu_custom_call.1} parent=5 // pred_check_branch
        %281 = sbr.rel (%p278) target = $region12
      $region11: #{tpu_custom_call.1} parent=5 // pred_region
        %s282 = ssub.s32 %s33, 1
        // Predicated region
        $region13: #{tpu_custom_call.1} parent=11 // pred_check
          %p283 = pneg %p132
        $region14: #{tpu_custom_call.1} parent=11 // pred_check_branch
          %285 = sbr.rel (%p283) target = $region16
        $region15: #{tpu_custom_call.1} parent=11 // pred_region
          %287 = vsyncadd [#allocation5], 0
          %s288 = sshll.u32 %s4, 4
          %s289 = int_to_ptr.hbm [resolvable:$true] %s288
          %s290 = sshll.u32 [#allocation4], 4
          %s291 = int_to_ptr.vmem [resolvable:$true] %s290
          %296 = dma.hbm_to_vmem [thread:$0]  %s289, 512, %s291, [#allocation5], 128, 128, 8
        $region16: #{tpu_custom_call.1} parent=11 // pred_fallthru
          _
        // Predicated region
        $region17: #{tpu_custom_call.1} parent=11 // pred_check
          %p297 = pneg %p153
        $region18: #{tpu_custom_call.1} parent=11 // pred_check_branch
          %299 = sbr.rel (%p297) target = $region20
        $region19: #{tpu_custom_call.1} parent=11 // pred_region
          %301 = vsyncadd [#allocation8], 0
          %s302 = sshll.u32 %s5, 4
          %s303 = int_to_ptr.hbm [resolvable:$true] %s302
          %s304 = sshll.u32 [#allocation7], 4
          %s305 = int_to_ptr.vmem [resolvable:$true] %s304
          %310 = dma.hbm_to_vmem [thread:$0]  %s303, 512, %s305, [#allocation8], 128, 128, 8
        $region20: #{tpu_custom_call.1} parent=11 // pred_fallthru
          _
        // Predicated region
        $region21: #{tpu_custom_call.1} parent=11 // pred_check
          %p311 = pneg %p174
        $region22: #{tpu_custom_call.1} parent=11 // pred_check_branch
          %313 = sbr.rel (%p311) target = $region24
        $region23: #{tpu_custom_call.1} parent=11 // pred_region
          _
        $region24: #{tpu_custom_call.1} parent=11 // pred_fallthru
          _
        // Predicated region
        $region25: #{tpu_custom_call.1} parent=11 // pred_check
          %p314 = pneg %p195
        $region26: #{tpu_custom_call.1} parent=11 // pred_check_branch
          %316 = sbr.rel (%p314) target = $region28
        $region27: #{tpu_custom_call.1} parent=11 // pred_region
          _
        $region28: #{tpu_custom_call.1} parent=11 // pred_fallthru
          _
        // Predicated region
        $region29: #{tpu_custom_call.1} parent=11 // pred_check
          %p317 = pneg %p216
        $region30: #{tpu_custom_call.1} parent=11 // pred_check_branch
          %319 = sbr.rel (%p317) target = $region32
        $region31: #{tpu_custom_call.1} parent=11 // pred_region
          _
        $region32: #{tpu_custom_call.1} parent=11 // pred_fallthru
          _
      $region12: #{tpu_custom_call.1} parent=5 // pred_fallthru
        _
      %p320 = scmp.lt.s32.totalorder %s33, 2
      // Predicated region
      $region33: #{tpu_custom_call.1} parent=5 // pred_check
        %p321 = pneg %p320
      $region34: #{tpu_custom_call.1} parent=5 // pred_check_branch
        %323 = sbr.rel (%p321) target = $region36
      $region35: #{tpu_custom_call.1} parent=5 // pred_region
        // Predicated region
        $region37: #{tpu_custom_call.1} parent=35 // pred_check
          %p324 = pneg %p53
        $region38: #{tpu_custom_call.1} parent=35 // pred_check_branch
          %326 = sbr.rel (%p324) target = $region40
        $region39: #{tpu_custom_call.1} parent=35 // pred_region
          %p327 = scmp.lt.s32.totalorder %s33, 1
          %s328 = scalar_select %p327, %s33, 1
          %s329 = smul.addr %s328, 8
          %s330 = scalar_lea.vmem %s1, %s329
        $region40: #{tpu_custom_call.1} parent=35 // pred_fallthru
          _
        // Predicated region
        $region41: #{tpu_custom_call.1} parent=35 // pred_check
          %p331 = pneg %p79
        $region42: #{tpu_custom_call.1} parent=35 // pred_check_branch
          %333 = sbr.rel (%p331) target = $region44
        $region43: #{tpu_custom_call.1} parent=35 // pred_region
          %p334 = scmp.lt.s32.totalorder %s33, 1
          %s335 = scalar_select %p334, %s33, 1
          %s336 = scalar_lea.vmem %s2, %s335
        $region44: #{tpu_custom_call.1} parent=35 // pred_fallthru
          _
        // Predicated region
        $region45: #{tpu_custom_call.1} parent=35 // pred_check
          %p337 = pneg %p105
        $region46: #{tpu_custom_call.1} parent=35 // pred_check_branch
          %339 = sbr.rel (%p337) target = $region48
        $region47: #{tpu_custom_call.1} parent=35 // pred_region
          %p340 = scmp.lt.s32.totalorder %s33, 1
          %s341 = scalar_select %p340, %s33, 1
          %s342 = smul.addr %s341, 8
          %s343 = scalar_lea.vmem %s3, %s342
        $region48: #{tpu_custom_call.1} parent=35 // pred_fallthru
          _
      $region36: #{tpu_custom_call.1} parent=5 // pred_fallthru
        _
      %p344 = scmp.le.s32.totalorder 1, %s33
      %p345 = scmp.lt.s32.totalorder %s33, 3
      %p346 = pnand %p344, %p345
      %p347 = pneg %p346
      // Predicated region
      $region49: #{tpu_custom_call.1} parent=5 // pred_check
        _
      $region50: #{tpu_custom_call.1} parent=5 // pred_check_branch
        %349 = sbr.rel (%p346) target = $region52
      $region51: #{tpu_custom_call.1} parent=5 // pred_region
        %s350 = ssub.s32 %s33, 1
        // Predicated region
        $region53: #{tpu_custom_call.1} parent=51 // pred_check
          %p351 = pneg %p132
        $region54: #{tpu_custom_call.1} parent=51 // pred_check_branch
          %353 = sbr.rel (%p351) target = $region56
        $region55: #{tpu_custom_call.1} parent=51 // pred_region
          %355 = dma.done [#allocation5], 512
        $region56: #{tpu_custom_call.1} parent=51 // pred_fallthru
          _
        // Predicated region
        $region57: #{tpu_custom_call.1} parent=51 // pred_check
          %p356 = pneg %p153
        $region58: #{tpu_custom_call.1} parent=51 // pred_check_branch
          %358 = sbr.rel (%p356) target = $region60
        $region59: #{tpu_custom_call.1} parent=51 // pred_region
          %360 = dma.done [#allocation8], 512
        $region60: #{tpu_custom_call.1} parent=51 // pred_fallthru
          _
        %p361 = scmp.lt.s32.totalorder %s38, 1
        %s362 = scalar_select %p361, %s38, 1
        %s363 = smul.addr %s362, 8
        %s364 = scalar_lea.vmem %s1, %s363
        %p365 = pneg %p59
        %p366 = pneg %p56
        %p367 = scmp.lt.s32.totalorder %s38, 1
        %s368 = scalar_select %p367, %s38, 1
        %s369 = scalar_lea.vmem %s2, %s368
        %p370 = pneg %p85
        %p371 = pneg %p82
        %p372 = scmp.lt.s32.totalorder %s38, 1
        %s373 = scalar_select %p372, %s38, 1
        %s374 = smul.addr %s373, 8
        %s375 = scalar_lea.vmem %s3, %s374
        %p376 = pneg %p111
        %p377 = pneg %p108
        %p378 = pneg %p132
        %p379 = pneg %p129
        %p380 = pneg %p153
        %p381 = pneg %p150
        %p382 = pneg %p174
        %p383 = pneg %p171
        %p384 = pneg %p195
        %p385 = pneg %p192
        %p386 = pneg %p216
        %p387 = pneg %p213
        %p388 = pneg %p242
        %p389 = pneg %p239
        %s390 = sand.u32 %s229, 1
        %s391 = scalar_lea.sflag [#allocation6], %s390
        %s392 = sand.u32 %s229, 1
        %s393 = scalar_lea.vmem [#allocation9], %s392
        %p394 = pneg %p268
        %p395 = pneg %p265
        %s396 = sand.u32 %s255, 1
        %s397 = scalar_lea.sflag [#allocation11], %s396
        %s398 = sand.u32 %s255, 1
        %s399 = scalar_lea.vmem [#allocation10], %s398
        %p400 = scmp.lt.s32.totalorder %s38, 1
        %s401 = scalar_select %p400, %s38, 1
        %s402 = smul.addr %s401, 8
        %s403 = scalar_lea.vmem %s1, %s402
        %p404 = scmp.lt.s32.totalorder %s38, 1
        %s405 = scalar_select %p404, %s38, 1
        %s406 = scalar_lea.vmem %s2, %s405
        %p407 = scmp.lt.s32.totalorder %s38, 1
        %s408 = scalar_select %p407, %s38, 1
        %s409 = smul.addr %s408, 8
        %s410 = scalar_lea.vmem %s3, %s409
        %v411 = vld [vmem:[%s403] sm:$0xff]
        %v412 = vld [vmem:[%s406] sm:$0x1]
        %v413 = vld [vmem:[%s410] sm:$0xff]
        %v414 = vld [vmem:[#allocation4] sm:$0xff]
        %v415 = vld [vmem:[#allocation4 + $0x8] sm:$0xff]
        %v416 = vld [vmem:[#allocation4 + $0x10] sm:$0xff]
        %v417 = vld [vmem:[#allocation4 + $0x18] sm:$0xff]
        %v418 = vld [vmem:[#allocation7] sm:$0xff]
        %v419 = vld [vmem:[#allocation7 + $0x8] sm:$0xff]
        %v420 = vld [vmem:[#allocation7 + $0x10] sm:$0xff]
        %v421 = vld [vmem:[#allocation7 + $0x18] sm:$0xff]
        %vm422 = vcmask 261120
        %v424 = vsel %vm422, %v412, 0
        %426 = vmatpush.msra.mxu0 0.0
        %427 = vmatpush.msra.mxu0 0.0
        %428 = vmatpush.msra.mxu0 0.0
        %429 = vmatpush.msra.mxu0 0.0
        %430 = vmatpush.msra.mxu0 0.0
        %431 = vmatpush.msra.mxu0 0.0
        %432 = vmatpush.msra.mxu0 0.0
        %433 = vmatpush.msra.mxu0 0.0
        %434 = vmatpush.msra.mxu0 0.0
        %435 = vmatpush.msra.mxu0 0.0
        %436 = vmatpush.msra.mxu0 0.0
        %437 = vmatpush.msra.mxu0 0.0
        %438 = vmatpush.msra.mxu0 %v421
        %439 = vmatpush.msra.mxu0 %v420
        %440 = vmatpush.msra.mxu0 %v419
        %441 = vmatpush.msra.mxu0 %v418
        %442 = vmatmul.f32.gmra.mxu0 %v424
        %v443 = vpop.f32.mrf.mxu0
        %v444 = vadd.f32 0.0, %v443
        %445 = vdwg.mxu0
        %v446 = vperm.slane %v444, 0
        %v448 = vsel %vm422, %v411, 0
        %450 = vmatpush.msra.mxu0 0.0
        %451 = vmatpush.msra.mxu0 0.0
        %452 = vmatpush.msra.mxu0 0.0
        %453 = vmatpush.msra.mxu0 0.0
        %454 = vmatpush.msra.mxu0 0.0
        %455 = vmatpush.msra.mxu0 0.0
        %456 = vmatpush.msra.mxu0 0.0
        %457 = vmatpush.msra.mxu0 0.0
        %458 = vmatpush.msra.mxu0 0.0
        %459 = vmatpush.msra.mxu0 0.0
        %460 = vmatpush.msra.mxu0 0.0
        %461 = vmatpush.msra.mxu0 0.0
        %462 = vmatpush.msra.mxu0 %v417
        %463 = vmatpush.msra.mxu0 %v416
        %464 = vmatpush.msra.mxu0 %v415
        %465 = vmatpush.msra.mxu0 %v414
        %466 = vmatmul.f32.gmra.mxu0 %v448
        %v467 = vpop.f32.mrf.mxu0
        %v468 = vadd.f32 %v446, %v467
        %469 = vdwg.mxu0
        %v470 = vld [vmem:[%s6] sm:$0x1]
        %472 = vset.pattern.permute.xlu0 0
        %473 = vperm.xlu0 %472, %v413
        %v474 = vpop.permute.xlu0 %473
        %v477 = vperm.slane %v470, 0
        %v479 = vmul.f32 %v474, %v477
        %v480 = vadd.f32 %v468, %v479
        %v481 = vld [vmem:[%s7] sm:$0x1]
        %v483 = vperm.slane %v481, 0
        %v485 = vadd.f32 %v480, %v483
        %v486 = vtanh.pop %v485
        %v487 = vld [vmem:[%s8] sm:$0x1]
        %v489 = vsel %vm422, %v487, 0
        %v492 = vsel %vm422, %v486, 0
        %494 = vmatpush.xpose.msra.mxu0 0.0
        %495 = vmatpush.xpose.msra.mxu0 0.0
        %496 = vmatpush.xpose.msra.mxu0 0.0
        %497 = vmatpush.xpose.msra.mxu0 0.0
        %498 = vmatpush.xpose.msra.mxu0 0.0
        %499 = vmatpush.xpose.msra.mxu0 0.0
        %500 = vmatpush.xpose.msra.mxu0 0.0
        %501 = vmatpush.xpose.msra.mxu0 0.0
        %502 = vmatpush.xpose.msra.mxu0 0.0
        %503 = vmatpush.xpose.msra.mxu0 0.0
        %504 = vmatpush.xpose.msra.mxu0 0.0
        %505 = vmatpush.xpose.msra.mxu0 0.0
        %506 = vmatpush.xpose.msra.mxu0 0.0
        %507 = vmatpush.xpose.msra.mxu0 0.0
        %508 = vmatpush.xpose.msra.mxu0 0.0
        %509 = vmatpush.xpose.msra.mxu0 %v492
        %510 = vmatmul.f32.gmra.mxu0 %v489
        %v511 = vpop.f32.mrf.mxu0
        %v512 = vadd.f32 0.0, %v511
        %513 = vdwg.mxu0
        %v514 = vlaneseq
        %v515 = vand.u32 %v514, 127
        %s516 = sld [smem:[#allocation3 + %s38]]
        %v517 = vstv %s516
        %vm518 = vcmp.lt.s32.totalorder %v515, %v517
        %v519 = vsel %vm518, %v512, -1e+30
        %vm520 = vcmask 57344
        %v521 = vsel %vm520, %v519, -inf
        %522 = vmax.xlane.f32.xlu0 %v521
        %v523 = vpop.xlane.xlu0 %522
        %v524 = vsub.f32 %v519, %v523
        %v525 = vmul.f32 %v524, 1.442695
        %v526 = vpow.pop %v525
        %v527 = vsel %vm520, %v526, 0.0
        %528 = vadd.xlane.f32.xlu0 %v527
        %v529 = vpop.xlane.xlu0 %528
        %v530 = vrcp.pop %v529
        %v531 = vmul.f32 %v529, %v530
        %v532 = vsub.f32 2.0, %v531
        %v533 = vmul.f32 %v530, %v532
        %v534 = vmul.f32 %v526, %v533
        %vm535 = vcmask 64512
        %v537 = vsel %vm535, %v534, 0
        %539 = vmatpush.msra.mxu0 0.0
        %540 = vmatpush.msra.mxu0 0.0
        %541 = vmatpush.msra.mxu0 0.0
        %542 = vmatpush.msra.mxu0 0.0
        %543 = vmatpush.msra.mxu0 0.0
        %544 = vmatpush.msra.mxu0 0.0
        %545 = vmatpush.msra.mxu0 0.0
        %546 = vmatpush.msra.mxu0 0.0
        %547 = vmatpush.msra.mxu0 0.0
        %548 = vmatpush.msra.mxu0 0.0
        %549 = vmatpush.msra.mxu0 0.0
        %550 = vmatpush.msra.mxu0 0.0
        %551 = vmatpush.msra.mxu0 0.0
        %552 = vmatpush.msra.mxu0 0.0
        %553 = vmatpush.msra.mxu0 0.0
        %554 = vmatpush.msra.mxu0 %v411
        %555 = vmatmul.f32.gmra.mxu0 %v537
        %v556 = vpop.f32.mrf.mxu0
        %v557 = vadd.f32 0.0, %v556
        %558 = vdwg.mxu0
        %vm559 = vcmask 253952
        %560 = vst.msk [vmem:[%s393] sm:$0x1] %vm559, %v557
        %561 = vst.msk [vmem:[%s399] sm:$0x1] %vm520, %v534
        %s562 = sand.u32 %s229, 1
        %s563 = scalar_lea.sflag [#allocation6], %s562
        %s564 = sand.u32 %s229, 1
        %s565 = scalar_lea.vmem [#allocation9], %s564
        %s566 = sand.u32 %s255, 1
        %s567 = scalar_lea.sflag [#allocation11], %s566
        %s568 = sand.u32 %s255, 1
        %s569 = scalar_lea.vmem [#allocation10], %s568
        // Predicated region
        $region61: #{tpu_custom_call.1} parent=51 // pred_check
          %p570 = pneg %p239
        $region62: #{tpu_custom_call.1} parent=51 // pred_check_branch
          %572 = sbr.rel (%p570) target = $region64
        $region63: #{tpu_custom_call.1} parent=51 // pred_region
          %574 = vsyncadd %s563, 0
          %s575 = scalar_lea.hbm %s9, %s38
          %s577 = sshll.u32 %s565, 4
          %s578 = int_to_ptr.vmem [resolvable:$true] %s577
          %s579 = sshll.u32 %s575, 4
          %s580 = int_to_ptr.hbm [resolvable:$true] %s579
          %582 = dma.vmem_to_hbm [thread:$0]  %s578, 16, %s580, %s563
        $region64: #{tpu_custom_call.1} parent=51 // pred_fallthru
          _
        // Predicated region
        $region65: #{tpu_custom_call.1} parent=51 // pred_check
          %p583 = pneg %p265
        $region66: #{tpu_custom_call.1} parent=51 // pred_check_branch
          %585 = sbr.rel (%p583) target = $region68
        $region67: #{tpu_custom_call.1} parent=51 // pred_region
          %587 = vsyncadd %s567, 0
          %s588 = scalar_lea.hbm %s10, %s38
          %s590 = sshll.u32 %s569, 4
          %s591 = int_to_ptr.vmem [resolvable:$true] %s590
          %s592 = sshll.u32 %s588, 4
          %s593 = int_to_ptr.hbm [resolvable:$true] %s592
          %595 = dma.vmem_to_hbm [thread:$0]  %s591, 16, %s593, %s567
        $region68: #{tpu_custom_call.1} parent=51 // pred_fallthru
          _
      $region52: #{tpu_custom_call.1} parent=5 // pred_fallthru
        _
      %p596 = scmp.le.s32.totalorder 2, %s33
      // Predicated region
      $region69: #{tpu_custom_call.1} parent=5 // pred_check
        %p597 = pneg %p596
      $region70: #{tpu_custom_call.1} parent=5 // pred_check_branch
        %599 = sbr.rel (%p597) target = $region72
      $region71: #{tpu_custom_call.1} parent=5 // pred_region
        %s600 = ssub.s32 %s33, 2
        // Predicated region
        $region73: #{tpu_custom_call.1} parent=71 // pred_check
          %p601 = pneg %p245
        $region74: #{tpu_custom_call.1} parent=71 // pred_check_branch
          %603 = sbr.rel (%p601) target = $region76
        $region75: #{tpu_custom_call.1} parent=71 // pred_region
          %s604 = sand.u32 %s230, 1
          %s605 = scalar_lea.sflag [#allocation6], %s604
          %s606 = sand.u32 %s230, 1
          %s607 = scalar_lea.vmem [#allocation9], %s606
          %609 = dma.done %s605, 16
        $region76: #{tpu_custom_call.1} parent=71 // pred_fallthru
          _
        // Predicated region
        $region77: #{tpu_custom_call.1} parent=71 // pred_check
          %p610 = pneg %p271
        $region78: #{tpu_custom_call.1} parent=71 // pred_check_branch
          %612 = sbr.rel (%p610) target = $region80
        $region79: #{tpu_custom_call.1} parent=71 // pred_region
          %s613 = sand.u32 %s256, 1
          %s614 = scalar_lea.sflag [#allocation11], %s613
          %s615 = sand.u32 %s256, 1
          %s616 = scalar_lea.vmem [#allocation10], %s615
          %618 = dma.done %s614, 16
        $region80: #{tpu_custom_call.1} parent=71 // pred_fallthru
          _
      $region72: #{tpu_custom_call.1} parent=5 // pred_fallthru
        _
    $region6: #{tpu_custom_call.1} parent=1 // loop_footer
      %s37 = sadd.s32 1, %s33
    $region7: #{tpu_custom_call.1} parent=1 // loop_footer_branch
      %32 = sbr.rel target = $region3
    $region8: #{tpu_custom_call.1} parent=1 // loop_exit
      _
    %619 = vsyncpa [#allocation5], 1
    %s620 = scalar_lea.sflag [#allocation5], 1
    %621 = vsyncpa %s620, 1
    %622 = vsyncpa [#allocation8], 1
    %623 = vsyncpa [#allocation6], 1
    %s624 = scalar_lea.sflag [#allocation6], 1
    %625 = vsyncpa %s624, 1
    %626 = vsyncpa [#allocation11], 1
    %s627 = scalar_lea.sflag [#allocation11], 1
    %628 = vsyncpa %s627, 1

</llo_original>
